<compile_context>
chip_gen: v6e
topology: v6e:2x2x1
jax: 0.10.0
libtpu: 0.0.40
codegen_flags: <defaults>
</compile_context>

<pallas_src>
import functools

import jax
import jax.numpy as jnp
from jax import lax
from jax.experimental import pallas as pl
from jax.experimental.pallas import tpu as pltpu


def _hash_keep_masks(tm, h1, h2, row_base_u32, seed_u32):
    """Fallback dropout masks (interpret mode / non-TPU backends only).

    One iota pair + one trimmed finalizer round over a single (tm, max(H1,H2))
    uint32 array; bit 31 gives the layer-1 mask, bit 30 the layer-2 mask.
    Deterministic per (seed, global row, col).
    """
    hmax = max(h1, h2)
    row = lax.broadcasted_iota(jnp.int32, (tm, hmax), 0).astype(jnp.uint32)
    col = lax.broadcasted_iota(jnp.int32, (tm, hmax), 1).astype(jnp.uint32)
    key = ((row + row_base_u32) * jnp.uint32(0x9E3779B1)) ^ (col * jnp.uint32(0x85EBCA77))
    key = key ^ seed_u32
    key = key ^ (key >> jnp.uint32(16))
    key = key * jnp.uint32(0x7FEB352D)
    key = key ^ (key >> jnp.uint32(15))
    keep1 = (key[:, :h1] >> jnp.uint32(31)) != jnp.uint32(0)
    keep2 = ((key[:, :h2] >> jnp.uint32(30)) & jnp.uint32(1)) != jnp.uint32(0)
    return keep1, keep2


def prenet_kernel(seed_ref, x_ref, w1_ref, b1_ref, w2_ref, b2_ref, o_ref,
                  *, tm, use_hw_prng):
    h1 = w1_ref.shape[1]
    h2 = w2_ref.shape[1]

    keep1 = keep2 = None
    if use_hw_prng:
        # Independent, deterministic stream per row tile.
        pltpu.prng_seed(seed_ref[0], pl.program_id(0))
    else:
        seed_u32 = seed_ref[0].astype(jnp.uint32)
        row_base = (pl.program_id(0) * tm).astype(jnp.uint32)
        keep1, keep2 = _hash_keep_masks(tm, h1, h2, row_base, seed_u32)

    # Layer 1: Linear -> ReLU -> Dropout(0.5).  In-kernel bf16 cast of x,
    # bf16 MXU matmul, f32 accumulation.
    xb = x_ref[...].astype(jnp.bfloat16)
    a1 = jnp.dot(xb, w1_ref[...], preferred_element_type=jnp.float32)
    a1 = jnp.maximum(a1 + b1_ref[...], 0.0)       # b1 is (1, H1), broadcasts
    if use_hw_prng:
        keep1 = (pltpu.prng_random_bits((tm, h1)) & 1) != 0
    a1 = jnp.where(keep1, a1 + a1, 0.0)           # scale 1/(1-p)=2 folded into a1+a1

    # Layer 2: Linear -> ReLU -> Dropout(0.5).
    a2 = jnp.dot(a1.astype(jnp.bfloat16), w2_ref[...],
                 preferred_element_type=jnp.float32)
    a2 = jnp.maximum(a2 + b2_ref[...], 0.0)
    if use_hw_prng:
        keep2 = (pltpu.prng_random_bits((tm, h2)) & 1) != 0
    a2 = jnp.where(keep2, a2 + a2, 0.0)

    o_ref[...] = a2.astype(o_ref.dtype)


def prenet_forward(x, w1, b1, w2, b2, seed, *, tm=1024, use_hw_prng=None):
    """x: (B, T, D_in) float32. w1: (D_in, H1), b1: (H1,), w2: (H1, H2), b2: (H2,).

    Weights may be pre-cast to bf16 by the caller (cast-once); f32 weights are
    cast here.  Output is (B, T, H2) float32.
    """
    if use_hw_prng is None:
        # Hardware PRNG on real TPUs; trimmed hash fallback elsewhere
        # (e.g. CPU interpret mode where pltpu.prng_* may not lower).
        use_hw_prng = jax.default_backend() == "tpu"

    B, T, D_in = x.shape
    H1 = w1.shape[1]
    H2 = w2.shape[1]
    M = B * T

    x2d = x.reshape(M, D_in).astype(jnp.float32)   # bf16 cast happens in-kernel
    w1b = w1 if w1.dtype == jnp.bfloat16 else w1.astype(jnp.bfloat16)
    w2b = w2 if w2.dtype == jnp.bfloat16 else w2.astype(jnp.bfloat16)
    b1r = b1.reshape(1, H1).astype(jnp.float32)
    b2r = b2.reshape(1, H2).astype(jnp.float32)

    # Row tile: multiple of 8 sublanes, capped at `tm`; pad rows up to a tile
    # multiple only when needed (skip the pad when already aligned).
    m8 = max(8, -(-M // 8) * 8)
    tm = max(8, (min(tm, m8) // 8) * 8)
    mp = -(-m8 // tm) * tm
    if mp != M:
        x2d = jnp.pad(x2d, ((0, mp - M), (0, 0)))

    grid = (mp // tm,)
    seed_arr = jnp.asarray([seed], dtype=jnp.int32)

    cost = pl.CostEstimate(
        flops=2 * mp * (D_in * H1 + H1 * H2),
        transcendentals=0,
        bytes_accessed=(mp * D_in * 4 + mp * H2 * 4
                        + (D_in * H1 + H1 * H2) * 2 + (H1 + H2) * 4),
    )

    out2d = pl.pallas_call(
        functools.partial(prenet_kernel, tm=tm, use_hw_prng=use_hw_prng),
        out_shape=jax.ShapeDtypeStruct((mp, H2), jnp.float32),
        grid_spec=pltpu.PrefetchScalarGridSpec(
            num_scalar_prefetch=1,
            grid=grid,
            in_specs=[
                pl.BlockSpec((tm, D_in), lambda i, s: (i, 0)),    # x tile per step
                pl.BlockSpec((D_in, H1), lambda i, s: (0, 0)),    # weights VMEM-resident
                pl.BlockSpec((1, H1), lambda i, s: (0, 0)),
                pl.BlockSpec((H1, H2), lambda i, s: (0, 0)),
                pl.BlockSpec((1, H2), lambda i, s: (0, 0)),
            ],
            out_specs=pl.BlockSpec((tm, H2), lambda i, s: (i, 0)),
        ),
        compiler_params=pltpu.CompilerParams(
            # Row tiles shard across the two v7x TensorCores; no-op on v5e/v6e.
            dimension_semantics=("parallel",),
        ),
        cost_estimate=cost,
    )(seed_arr, x2d, w1b, b1r, w2b, b2r)

    return out2d[:M].reshape(B, T, H2)


def init_prenet_params(key, in_features, out_features=(256, 128)):
    """Deterministic init mirroring the module shapes.

    Linear weights use xavier_uniform with relu gain (as in init_layers),
    biases use PyTorch's default uniform(-1/sqrt(fan_in), 1/sqrt(fan_in)).
    Weights are returned transposed to (in, out) for the kernel.
    (Weights loaded from a PyTorch checkpoint are (out, in) and must be
    transposed before use.)
    """
    gain = jnp.sqrt(2.0)  # calculate_gain('relu')
    in_sizes = [in_features] + list(out_features[:-1])
    params = []
    for in_size, out_size in zip(in_sizes, out_features):
        key, kw, kb = jax.random.split(key, 3)
        limit = gain * jnp.sqrt(6.0 / (in_size + out_size))
        w = jax.random.uniform(kw, (in_size, out_size), jnp.float32, -limit, limit)
        blim = 1.0 / jnp.sqrt(in_size)
        b = jax.random.uniform(kb, (out_size,), jnp.float32, -blim, blim)
        params.append((w, b))
    return params


if __name__ == "__main__":
    B, T, IN_FEATURES = 2, 8, 32
    OUT_FEATURES = (256, 128)

    key = jax.random.PRNGKey(0)
    key, kx = jax.random.split(key)
    x = jax.random.normal(kx, (B, T, IN_FEATURES), dtype=jnp.float32)

    (w1, b1), (w2, b2) = init_prenet_params(key, IN_FEATURES, OUT_FEATURES)

    # Cast weights to bf16 once (cast-once, not per call).
    w1 = w1.astype(jnp.bfloat16)
    w2 = w2.astype(jnp.bfloat16)

    # TODO(synk): dropout RNG stream differs from torch.nn.Dropout's; masks are
    # deterministic per (seed, row-tile) but not bitwise-comparable to PyTorch.
    out = prenet_forward(x, w1, b1, w2, b2, seed=1234)
    out = jax.block_until_ready(out)

    assert out.shape == (B, T, OUT_FEATURES[-1]), out.shape
    assert out.dtype == jnp.float32
    print("KERNEL_OK")
</pallas_src>

<mosaic_0001>
module attributes {stable_mosaic.version = 11 : i64} {
  func.func @prenet_kernel(%arg0: i32, %arg1: memref<1xi32, #tpu.memory_space<smem>>, %arg2: memref<16x32xf32, #tpu.memory_space<vmem>>, %arg3: memref<32x256xbf16, #tpu.memory_space<vmem>>, %arg4: memref<1x256xf32, #tpu.memory_space<vmem>>, %arg5: memref<256x128xbf16, #tpu.memory_space<vmem>>, %arg6: memref<1x128xf32, #tpu.memory_space<vmem>>, %arg7: memref<16x128xf32, #tpu.memory_space<vmem>>) attributes {dimension_semantics = [#tpu.dimension_semantics<parallel>], iteration_bounds = array<i64: 1>, scalar_prefetch = 1 : i64, scratch_operands = 0 : i64, tpu.core_type = #tpu.core_type<tc>, window_params = [{transform_indices = @transform_0, window_bounds = array<i64: 16, 32>}, {pipeline_mode = #tpu.pipeline_mode<synchronous>, transform_indices = @transform_1, window_bounds = array<i64: 32, 256>}, {pipeline_mode = #tpu.pipeline_mode<synchronous>, transform_indices = @transform_2, window_bounds = array<i64: 1, 256>}, {pipeline_mode = #tpu.pipeline_mode<synchronous>, transform_indices = @transform_3, window_bounds = array<i64: 256, 128>}, {pipeline_mode = #tpu.pipeline_mode<synchronous>, transform_indices = @transform_4, window_bounds = array<i64: 1, 128>}, {transform_indices = @transform_5, window_bounds = array<i64: 16, 128>}]} {
    %c0 = arith.constant 0 : index
    %0 = memref.load %arg1[%c0] : memref<1xi32, #tpu.memory_space<smem>>
    %c16_i32 = arith.constant 16 : i32
    %1 = arith.muli %arg0, %c16_i32 : i32
    %2 = tpu.iota {dimensions = array<i32: 0>} : vector<16x256xi32>
    %3 = tpu.iota {dimensions = array<i32: 1>} : vector<16x256xi32>
    %4 = vector.broadcast %1 : i32 to vector<16x256xi32>
    %5 = arith.addi %2, %4 : vector<16x256xi32>
    %c-1640531535_i32 = arith.constant -1640531535 : i32
    %6 = vector.broadcast %c-1640531535_i32 : i32 to vector<16x256xi32>
    %7 = arith.muli %5, %6 : vector<16x256xi32>
    %c-2048144777_i32 = arith.constant -2048144777 : i32
    %8 = vector.broadcast %c-2048144777_i32 : i32 to vector<16x256xi32>
    %9 = arith.muli %3, %8 : vector<16x256xi32>
    %10 = arith.xori %7, %9 : vector<16x256xi32>
    %11 = vector.broadcast %0 : i32 to vector<16x256xi32>
    %12 = arith.xori %10, %11 : vector<16x256xi32>
    %c16_i32_0 = arith.constant 16 : i32
    %13 = vector.broadcast %c16_i32_0 : i32 to vector<16x256xi32>
    %14 = arith.shrui %12, %13 : vector<16x256xi32>
    %15 = arith.xori %12, %14 : vector<16x256xi32>
    %c2146121005_i32 = arith.constant 2146121005 : i32
    %16 = vector.broadcast %c2146121005_i32 : i32 to vector<16x256xi32>
    %17 = arith.muli %15, %16 : vector<16x256xi32>
    %c15_i32 = arith.constant 15 : i32
    %18 = vector.broadcast %c15_i32 : i32 to vector<16x256xi32>
    %19 = arith.shrui %17, %18 : vector<16x256xi32>
    %20 = arith.xori %17, %19 : vector<16x256xi32>
    %c31_i32 = arith.constant 31 : i32
    %21 = vector.broadcast %c31_i32 : i32 to vector<16x256xi32>
    %22 = arith.shrui %20, %21 : vector<16x256xi32>
    %c0_i32 = arith.constant 0 : i32
    %23 = vector.broadcast %c0_i32 : i32 to vector<16x256xi32>
    %24 = arith.cmpi ne, %22, %23 : vector<16x256xi32>
    %25 = vector.extract_strided_slice %20 {offsets = [0, 0], sizes = [16, 128], strides = [1, 1]} : vector<16x256xi32> to vector<16x128xi32>
    %c30_i32 = arith.constant 30 : i32
    %26 = vector.broadcast %c30_i32 : i32 to vector<16x128xi32>
    %27 = arith.shrui %25, %26 : vector<16x128xi32>
    %c1_i32 = arith.constant 1 : i32
    %28 = vector.broadcast %c1_i32 : i32 to vector<16x128xi32>
    %29 = arith.andi %27, %28 : vector<16x128xi32>
    %c0_i32_1 = arith.constant 0 : i32
    %30 = vector.broadcast %c0_i32_1 : i32 to vector<16x128xi32>
    %31 = arith.cmpi ne, %29, %30 : vector<16x128xi32>
    %c0_2 = arith.constant 0 : index
    %c0_3 = arith.constant 0 : index
    %32 = vector.load %arg2[%c0_2, %c0_3] : memref<16x32xf32, #tpu.memory_space<vmem>>, vector<16x32xf32>
    %33 = arith.truncf %32 : vector<16x32xf32> to vector<16x32xbf16>
    %c0_4 = arith.constant 0 : index
    %c0_5 = arith.constant 0 : index
    %34 = vector.load %arg3[%c0_4, %c0_5] : memref<32x256xbf16, #tpu.memory_space<vmem>>, vector<32x256xbf16>
    %cst = arith.constant dense<0.000000e+00> : vector<16x256xf32>
    %35 = tpu.matmul %33, %34, %cst {dimension_numbers = #tpu.dot_dimension_numbers<[1], [0], [0], [1], [0, 0, 1, 1], [], []>} : vector<16x32xbf16>, vector<32x256xbf16>, vector<16x256xf32> -> vector<16x256xf32>
    %c0_6 = arith.constant 0 : index
    %c0_7 = arith.constant 0 : index
    %36 = vector.load %arg4[%c0_6, %c0_7] : memref<1x256xf32, #tpu.memory_space<vmem>>, vector<1x256xf32>
    %37 = vector.broadcast %36 : vector<1x256xf32> to vector<16x256xf32>
    %38 = arith.addf %35, %37 : vector<16x256xf32>
    %cst_8 = arith.constant 0.000000e+00 : f32
    %39 = vector.broadcast %cst_8 : f32 to vector<16x256xf32>
    %40 = arith.maximumf %38, %39 : vector<16x256xf32>
    %41 = arith.addf %40, %40 : vector<16x256xf32>
    %cst_9 = arith.constant 0.000000e+00 : f32
    %42 = vector.broadcast %cst_9 : f32 to vector<16x256xf32>
    %43 = arith.select %24, %41, %42 : vector<16x256xi1>, vector<16x256xf32>
    %44 = arith.truncf %43 : vector<16x256xf32> to vector<16x256xbf16>
    %c0_10 = arith.constant 0 : index
    %c0_11 = arith.constant 0 : index
    %45 = vector.load %arg5[%c0_10, %c0_11] : memref<256x128xbf16, #tpu.memory_space<vmem>>, vector<256x128xbf16>
    %cst_12 = arith.constant dense<0.000000e+00> : vector<16x128xf32>
    %46 = tpu.matmul %44, %45, %cst_12 {dimension_numbers = #tpu.dot_dimension_numbers<[1], [0], [0], [1], [0, 0, 1, 1], [], []>} : vector<16x256xbf16>, vector<256x128xbf16>, vector<16x128xf32> -> vector<16x128xf32>
    %c0_13 = arith.constant 0 : index
    %c0_14 = arith.constant 0 : index
    %47 = vector.load %arg6[%c0_13, %c0_14] : memref<1x128xf32, #tpu.memory_space<vmem>>, vector<1x128xf32>
    %48 = vector.broadcast %47 : vector<1x128xf32> to vector<16x128xf32>
    %49 = arith.addf %46, %48 : vector<16x128xf32>
    %cst_15 = arith.constant 0.000000e+00 : f32
    %50 = vector.broadcast %cst_15 : f32 to vector<16x128xf32>
    %51 = arith.maximumf %49, %50 : vector<16x128xf32>
    %52 = arith.addf %51, %51 : vector<16x128xf32>
    %cst_16 = arith.constant 0.000000e+00 : f32
    %53 = vector.broadcast %cst_16 : f32 to vector<16x128xf32>
    %54 = arith.select %31, %52, %53 : vector<16x128xi1>, vector<16x128xf32>
    %c0_17 = arith.constant 0 : index
    %c0_18 = arith.constant 0 : index
    %55 = vector.load %arg7[%c0_17, %c0_18] : memref<16x128xf32, #tpu.memory_space<vmem>>, vector<16x128xf32>
    tpu.vector_store %arg7[%c0_17, %c0_18], %54 {strides = array<i32>} : memref<16x128xf32, #tpu.memory_space<vmem>>, vector<16x128xf32>,
    return
  }
  func.func @transform_0(%arg0: i32, %arg1: memref<1xi32, #tpu.memory_space<smem>>) -> (i32, i32) {
    %c0_i32 = arith.constant 0 : i32
    %c0_i32_0 = arith.constant 0 : i32
    return %arg0, %c0_i32 : i32, i32
  }
  func.func @transform_1(%arg0: i32, %arg1: memref<1xi32, #tpu.memory_space<smem>>) -> (i32, i32) {
    %c0_i32 = arith.constant 0 : i32
    %c0_i32_0 = arith.constant 0 : i32
    %c0_i32_1 = arith.constant 0 : i32
    return %c0_i32, %c0_i32_0 : i32, i32
  }
  func.func @transform_2(%arg0: i32, %arg1: memref<1xi32, #tpu.memory_space<smem>>) -> (i32, i32) {
    %c0_i32 = arith.constant 0 : i32
    %c0_i32_0 = arith.constant 0 : i32
    %c0_i32_1 = arith.constant 0 : i32
    return %c0_i32, %c0_i32_0 : i32, i32
  }
  func.func @transform_3(%arg0: i32, %arg1: memref<1xi32, #tpu.memory_space<smem>>) -> (i32, i32) {
    %c0_i32 = arith.constant 0 : i32
    %c0_i32_0 = arith.constant 0 : i32
    %c0_i32_1 = arith.constant 0 : i32
    return %c0_i32, %c0_i32_0 : i32, i32
  }
  func.func @transform_4(%arg0: i32, %arg1: memref<1xi32, #tpu.memory_space<smem>>) -> (i32, i32) {
    %c0_i32 = arith.constant 0 : i32
    %c0_i32_0 = arith.constant 0 : i32
    %c0_i32_1 = arith.constant 0 : i32
    return %c0_i32, %c0_i32_0 : i32, i32
  }
  func.func @transform_5(%arg0: i32, %arg1: memref<1xi32, #tpu.memory_space<smem>>) -> (i32, i32) {
    %c0_i32 = arith.constant 0 : i32
    %c0_i32_0 = arith.constant 0 : i32
    return %arg0, %c0_i32 : i32, i32
  }
}

</mosaic_0001>

<llo_original>
// kernel: tpu_custom_call.1
$region0: #{tpu_custom_call.1}
  #allocation0 [shape = 'u32[]', space=smem, size = 0x4, offset = 0x4, fixed_abs, tag = 'smem constant byte address 0x4 - core index']
  #allocation1 [shape = 'u32[144,128]{1,0:T(1,128)}', space=vmem, size = 0x12000, scoped, tag = 'internal scratch']
  #allocation2 [shape = 's32[1]{0}', space=sflag, size = 0x4, scoped, tag = 'scoped memory for tpu_custom_call.1']
  #allocation3 [shape = 's32[1]{0:T(128)S(6)}', space=smem, size = 0x200, scoped, tag = 'prefetched SMEM operand 0']
  %s0 = inlined_call_operand.<no memory space> [shape: s32[1], index: 0, kind: input, shape index: {}]
  %s1 = inlined_call_operand.hbm [shape: f32[16,32], index: 1, kind: input, shape index: {}]
  %s2 = inlined_call_operand.hbm [shape: bf16[32,256], index: 2, kind: input, shape index: {}]
  %s3 = inlined_call_operand.vmem [shape: f32[1,256], index: 3, kind: input, shape index: {}]
  %s4 = inlined_call_operand.hbm [shape: bf16[256,128], index: 4, kind: input, shape index: {}]
  %s5 = inlined_call_operand.vmem [shape: f32[1,128], index: 5, kind: input, shape index: {}]
  %s6 = inlined_call_operand.hbm [shape: f32[16,128], index: 6, kind: output, shape index: {}]
  %s7 = sld [smem:[#allocation0]]
  $region42: #{tpu_custom_call.1} parent=0
    _
  %s9 = ssub.s32 1, %s7
  %s10 = scalar_select 0, %s9, %s7
  %11 = sst [smem:[#allocation3]] %s0
  $region1: #{tpu_custom_call.1} parent=0
    #allocation4 [shape = 'u8[8192]{0}', space=vmem, size = 0x2000, scoped, tag = 'input window, operand 1, single buffered']
    #allocation5 [shape = 's32[1]{0}', space=sflag, size = 0x4, scoped, tag = 'scoped memory for tpu_custom_call.1']
    #allocation6 [shape = 's32[1]{0}', space=sflag, size = 0x4, scoped, tag = 'scoped memory for tpu_custom_call.1']
    #allocation7 [shape = 'u8[16384]{0}', space=vmem, size = 0x4000, scoped, tag = 'input window, operand 2, single buffered']
    #allocation8 [shape = 's32[1]{0}', space=sflag, size = 0x4, scoped, tag = 'scoped memory for tpu_custom_call.1']
    #allocation9 [shape = 'u8[65536]{0}', space=vmem, size = 0x10000, scoped, tag = 'input window, operand 4, single buffered']
    #allocation10 [shape = 'u8[8192]{0}', space=vmem, size = 0x2000, scoped, tag = 'output window, operand 0, single buffered']
    %12 = vsyncpa [#allocation5], 0
    %13 = vsyncpa [#allocation8], 0
    %14 = vsyncpa [#allocation6], 0
    // Predicated region
    $region2: #{tpu_custom_call.1} parent=1 // pred_check
      _
    $region3: #{tpu_custom_call.1} parent=1 // pred_check_branch
      %16 = sbr.rel (0) target = $region5
    $region4: #{tpu_custom_call.1} parent=1 // pred_region
      %s18 = ssub.s32 256, 256
      %19 = vsyncadd [#allocation5], %s18
      %s20 = sshll.u32 [#allocation4], 4
      %s21 = int_to_ptr.vmem [resolvable:$true] %s20
      %26 = dma.hbm_to_vmem [thread:$0]  %s1, 256, %s21, [#allocation5], 128, 128, 8
    $region5: #{tpu_custom_call.1} parent=1 // pred_fallthru
      _
    // Predicated region
    $region6: #{tpu_custom_call.1} parent=1 // pred_check
      _
    $region7: #{tpu_custom_call.1} parent=1 // pred_check_branch
      %28 = sbr.rel (0) target = $region9
    $region8: #{tpu_custom_call.1} parent=1 // pred_region
      %s30 = ssub.s32 512, 512
      %31 = vsyncadd [#allocation8], %s30
      %s32 = sshll.u32 [#allocation7], 4
      %s33 = int_to_ptr.vmem [resolvable:$true] %s32
      %38 = dma.hbm_to_vmem [thread:$0]  %s2, 512, %s33, [#allocation8], 128, 128, 8
    $region9: #{tpu_custom_call.1} parent=1 // pred_fallthru
      _
    // Predicated region
    $region10: #{tpu_custom_call.1} parent=1 // pred_check
      _
    $region11: #{tpu_custom_call.1} parent=1 // pred_check_branch
      %40 = sbr.rel (0) target = $region13
    $region12: #{tpu_custom_call.1} parent=1 // pred_region
      _
    $region13: #{tpu_custom_call.1} parent=1 // pred_fallthru
      _
    // Predicated region
    $region14: #{tpu_custom_call.1} parent=1 // pred_check
      _
    $region15: #{tpu_custom_call.1} parent=1 // pred_check_branch
      %42 = sbr.rel (0) target = $region17
    $region16: #{tpu_custom_call.1} parent=1 // pred_region
      %s44 = ssub.s32 2048, 2048
      %45 = vsyncadd [#allocation8], %s44
      %s46 = sshll.u32 [#allocation9], 4
      %s47 = int_to_ptr.vmem [resolvable:$true] %s46
      %52 = dma.hbm_to_vmem [thread:$0]  %s4, 2048, %s47, [#allocation8], 64, 64, 4
    $region17: #{tpu_custom_call.1} parent=1 // pred_fallthru
      _
    // Predicated region
    $region18: #{tpu_custom_call.1} parent=1 // pred_check
      _
    $region19: #{tpu_custom_call.1} parent=1 // pred_check_branch
      %54 = sbr.rel (0) target = $region21
    $region20: #{tpu_custom_call.1} parent=1 // pred_region
      _
    $region21: #{tpu_custom_call.1} parent=1 // pred_fallthru
      _
    // Predicated region
    $region22: #{tpu_custom_call.1} parent=1 // pred_check
      _
    $region23: #{tpu_custom_call.1} parent=1 // pred_check_branch
      %56 = sbr.rel (0) target = $region25
    $region24: #{tpu_custom_call.1} parent=1 // pred_region
      %57 = dma.done [#allocation5], 256
    $region25: #{tpu_custom_call.1} parent=1 // pred_fallthru
      _
    // Predicated region
    $region26: #{tpu_custom_call.1} parent=1 // pred_check
      _
    $region27: #{tpu_custom_call.1} parent=1 // pred_check_branch
      %59 = sbr.rel (0) target = $region29
    $region28: #{tpu_custom_call.1} parent=1 // pred_region
      %60 = dma.done [#allocation8], 512
    $region29: #{tpu_custom_call.1} parent=1 // pred_fallthru
      _
    // Predicated region
    $region30: #{tpu_custom_call.1} parent=1 // pred_check
      _
    $region31: #{tpu_custom_call.1} parent=1 // pred_check_branch
      %62 = sbr.rel (0) target = $region33
    $region32: #{tpu_custom_call.1} parent=1 // pred_region
      %63 = dma.done [#allocation8], 2048
    $region33: #{tpu_custom_call.1} parent=1 // pred_fallthru
      _
    %s65 = sld [smem:[#allocation3]]
    %s66 = smul.u32 0, 16
    %v67 = vlaneseq
    %v68 = vshrl.u32 %v67, 7
    %v69 = vadd.s32 %v68, 8
    %v70 = vlaneseq
    %v71 = vand.u32 %v70, 127
    %v72 = vadd.s32 %v71, 128
    %v73 = vstv %s66
    %v74 = vadd.s32 %v68, %v73
    %v75 = vadd.s32 %v69, %v73
    %v76 = vmul.u32 %v74, 2654435761
    %v77 = vmul.u32 %v75, 2654435761
    %v78 = vmul.u32 %v71, 2246822519
    %v79 = vmul.u32 %v72, 2246822519
    %v80 = vxor.u32 %v76, %v78
    %v81 = vxor.u32 %v76, %v79
    %v82 = vxor.u32 %v77, %v78
    %v83 = vxor.u32 %v77, %v79
    %v84 = vstv %s65
    %v85 = vxor.u32 %v80, %v84
    %v86 = vxor.u32 %v81, %v84
    %v87 = vxor.u32 %v82, %v84
    %v88 = vxor.u32 %v83, %v84
    %v89 = vshrl.u32 %v85, 16
    %v90 = vshrl.u32 %v86, 16
    %v91 = vshrl.u32 %v87, 16
    %v92 = vshrl.u32 %v88, 16
    %v93 = vxor.u32 %v85, %v89
    %v94 = vxor.u32 %v86, %v90
    %v95 = vxor.u32 %v87, %v91
    %v96 = vxor.u32 %v88, %v92
    %v97 = vmul.u32 %v93, 2146121005
    %v98 = vmul.u32 %v94, 2146121005
    %v99 = vmul.u32 %v95, 2146121005
    %v100 = vmul.u32 %v96, 2146121005
    %v101 = vshrl.u32 %v97, 15
    %v102 = vshrl.u32 %v98, 15
    %v103 = vshrl.u32 %v99, 15
    %v104 = vshrl.u32 %v100, 15
    %v105 = vxor.u32 %v97, %v101
    %v106 = vxor.u32 %v98, %v102
    %v107 = vxor.u32 %v99, %v103
    %v108 = vxor.u32 %v100, %v104
    %v109 = vshrl.u32 %v105, 31
    %v110 = vshrl.u32 %v106, 31
    %v111 = vshrl.u32 %v107, 31
    %v112 = vshrl.u32 %v108, 31
    %vm113 = vcmp.ne.s32.totalorder %v109, 0
    %vm114 = vcmp.ne.s32.totalorder %v110, 0
    %vm115 = vcmp.ne.s32.totalorder %v111, 0
    %vm116 = vcmp.ne.s32.totalorder %v112, 0
    %v117 = vshrl.u32 %v105, 30
    %v118 = vshrl.u32 %v107, 30
    %v119 = vand.u32 %v117, 1
    %v120 = vand.u32 %v118, 1
    %vm121 = vcmp.ne.s32.totalorder %v119, 0
    %vm122 = vcmp.ne.s32.totalorder %v120, 0
    %v123 = vld [vmem:[#allocation4] sm:$0xff]
    %v124 = vld [vmem:[#allocation4 + $0x8] sm:$0xff]
    %v125 = vpack.c.bf16 %v124, %v123
    %v126 = vld [vmem:[#allocation7] sm:$0xff]
    %v127 = vld [vmem:[#allocation7 + $0x8] sm:$0xff]
    %v128 = vld [vmem:[#allocation7 + $0x10] sm:$0xff]
    %v129 = vld [vmem:[#allocation7 + $0x18] sm:$0xff]
    %v130 = vld [vmem:[%s3] sm:$0x3]
    %v132 = vlaneseq
    %v133 = vshrl.u32 %v132, 7
    %v134 = vsub.s32 0, %v133
    %v135 = vrot.slane %v130, %v134
    %v136 = vlaneseq
    %v137 = vshrl.u32 %v136, 7
    %v138 = vsub.s32 1, %v137
    %v139 = vrot.slane %v130, %v138
    %v146 = vunpack.c.l.b16 %v126
    %v147 = vunpack.c.h.b16 %v126
    %v148 = vunpack.c.l.b16 %v127
    %v149 = vunpack.c.h.b16 %v127
    %v150 = vunpack.c.l.b16 %v128
    %v151 = vunpack.c.h.b16 %v128
    %v152 = vunpack.c.l.b16 %v129
    %v153 = vunpack.c.h.b16 %v129
    %v154 = vpack.c.b16 %v148, %v146
    %v155 = vpack.c.b16 %v149, %v147
    %v156 = vpack.c.b16 %v152, %v150
    %v157 = vpack.c.b16 %v153, %v151
    %vm162 = vcmask 261120
    %v164 = vsel %vm162, %v125, 0
    %166 = vmatprep.subr.bf16.mxu0 0
    %167 = vmatpush1.bf16.msra.mxu0 0
    %168 = vmatprep.subr.bf16.mxu0 0
    %169 = vmatpush1.bf16.msra.mxu0 0
    %170 = vmatprep.subr.bf16.mxu0 0
    %171 = vmatpush1.bf16.msra.mxu0 0
    %172 = vmatprep.subr.bf16.mxu0 0
    %173 = vmatpush1.bf16.msra.mxu0 0
    %174 = vmatprep.subr.bf16.mxu0 0
    %175 = vmatpush1.bf16.msra.mxu0 0
    %176 = vmatprep.subr.bf16.mxu0 0
    %177 = vmatpush1.bf16.msra.mxu0 0
    %178 = vmatprep.subr.bf16.mxu0 %v157
    %179 = vmatpush1.bf16.msra.mxu0 %v156
    %180 = vmatprep.subr.bf16.mxu0 %v155
    %181 = vmatpush1.bf16.msra.mxu0 %v154
    %182 = vmatprep.subr.bf16.mxu0 0
    %183 = vmatpush2.bf16.msra.mxu0 0
    %184 = vmatprep.subr.bf16.mxu0 0
    %185 = vmatpush2.bf16.msra.mxu0 0
    %186 = vmatprep.subr.bf16.mxu0 0
    %187 = vmatpush2.bf16.msra.mxu0 0
    %188 = vmatprep.subr.bf16.mxu0 0
    %189 = vmatpush2.bf16.msra.mxu0 0
    %190 = vmatprep.subr.bf16.mxu0 0
    %191 = vmatpush2.bf16.msra.mxu0 0
    %192 = vmatprep.subr.bf16.mxu0 0
    %193 = vmatpush2.bf16.msra.mxu0 0
    %194 = vmatprep.subr.bf16.mxu0 0
    %195 = vmatpush2.bf16.msra.mxu0 0
    %196 = vmatprep.subr.bf16.mxu0 0
    %197 = vmatpush2.bf16.msra.mxu0 0
    %198 = vmatprep.mubr.bf16.mxu0 0
    %199 = vmatmul.mubr.bf16.gmra.mxu0 %v164
    %v200 = vpop.f32.mrf.mxu0
    %v201 = vadd.f32 %v135, %v200
    %v202 = vpop.f32.mrf.mxu0
    %v203 = vadd.f32 %v139, %v202
    %v204 = vpop.f32.mrf.mxu0
    %v205 = vadd.f32 %v135, %v204
    %v206 = vpop.f32.mrf.mxu0
    %v207 = vadd.f32 %v139, %v206
    %208 = vdwg.mxu0
    %v209 = vmax.f32 %v201, 0.0
    %v210 = vmax.f32 %v203, 0.0
    %v211 = vmax.f32 %v205, 0.0
    %v212 = vmax.f32 %v207, 0.0
    %v213 = vadd.f32 %v209, %v209
    %v214 = vadd.f32 %v210, %v210
    %v215 = vadd.f32 %v211, %v211
    %v216 = vadd.f32 %v212, %v212
    %v217 = vsel %vm113, %v213, 0.0
    %v218 = vsel %vm114, %v214, 0.0
    %v219 = vsel %vm115, %v215, 0.0
    %v220 = vsel %vm116, %v216, 0.0
    %v221 = vpack.c.bf16 %v219, %v217
    %v222 = vpack.c.bf16 %v220, %v218
    %v223 = vld [vmem:[#allocation9] sm:$0xf]
    %v224 = vld [vmem:[#allocation9 + $0x4] sm:$0xf]
    %v225 = vld [vmem:[#allocation9 + $0x8] sm:$0xf]
    %v226 = vld [vmem:[#allocation9 + $0xc] sm:$0xf]
    %v227 = vld [vmem:[#allocation9 + $0x10] sm:$0xf]
    %v228 = vld [vmem:[#allocation9 + $0x14] sm:$0xf]
    %v229 = vld [vmem:[#allocation9 + $0x18] sm:$0xf]
    %v230 = vld [vmem:[#allocation9 + $0x1c] sm:$0xf]
    %v231 = vld [vmem:[#allocation9 + $0x20] sm:$0xf]
    %v232 = vld [vmem:[#allocation9 + $0x24] sm:$0xf]
    %v233 = vld [vmem:[#allocation9 + $0x28] sm:$0xf]
    %v234 = vld [vmem:[#allocation9 + $0x2c] sm:$0xf]
    %v235 = vld [vmem:[#allocation9 + $0x30] sm:$0xf]
    %v236 = vld [vmem:[#allocation9 + $0x34] sm:$0xf]
    %v237 = vld [vmem:[#allocation9 + $0x38] sm:$0xf]
    %v238 = vld [vmem:[#allocation9 + $0x3c] sm:$0xf]
    %v239 = vld [vmem:[#allocation9 + $0x40] sm:$0xf]
    %v240 = vld [vmem:[#allocation9 + $0x44] sm:$0xf]
    %v241 = vld [vmem:[#allocation9 + $0x48] sm:$0xf]
    %v242 = vld [vmem:[#allocation9 + $0x4c] sm:$0xf]
    %v243 = vld [vmem:[#allocation9 + $0x50] sm:$0xf]
    %v244 = vld [vmem:[#allocation9 + $0x54] sm:$0xf]
    %v245 = vld [vmem:[#allocation9 + $0x58] sm:$0xf]
    %v246 = vld [vmem:[#allocation9 + $0x5c] sm:$0xf]
    %v247 = vld [vmem:[#allocation9 + $0x60] sm:$0xf]
    %v248 = vld [vmem:[#allocation9 + $0x64] sm:$0xf]
    %v249 = vld [vmem:[#allocation9 + $0x68] sm:$0xf]
    %v250 = vld [vmem:[#allocation9 + $0x6c] sm:$0xf]
    %v251 = vld [vmem:[#allocation9 + $0x70] sm:$0xf]
    %v252 = vld [vmem:[#allocation9 + $0x74] sm:$0xf]
    %v253 = vld [vmem:[#allocation9 + $0x78] sm:$0xf]
    %v254 = vld [vmem:[#allocation9 + $0x7c] sm:$0xf]
    %v255 = vld [vmem:[%s5] sm:$0x1]
    %v257 = vlaneseq
    %v258 = vshrl.u32 %v257, 7
    %v259 = vsub.s32 0, %v258
    %v260 = vrot.slane %v255, %v259
    %v294 = vunpack.c.l.b16 %v223
    %v295 = vunpack.c.l.b16 %v224
    %v296 = vunpack.c.l.b16 %v225
    %v297 = vunpack.c.l.b16 %v226
    %v298 = vunpack.c.l.b16 %v227
    %v299 = vunpack.c.l.b16 %v228
    %v300 = vunpack.c.l.b16 %v229
    %v301 = vunpack.c.l.b16 %v230
    %v302 = vunpack.c.l.b16 %v231
    %v303 = vunpack.c.l.b16 %v232
    %v304 = vunpack.c.l.b16 %v233
    %v305 = vunpack.c.l.b16 %v234
    %v306 = vunpack.c.l.b16 %v235
    %v307 = vunpack.c.l.b16 %v236
    %v308 = vunpack.c.l.b16 %v237
    %v309 = vunpack.c.l.b16 %v238
    %v310 = vunpack.c.l.b16 %v239
    %v311 = vunpack.c.l.b16 %v240
    %v312 = vunpack.c.l.b16 %v241
    %v313 = vunpack.c.l.b16 %v242
    %v314 = vunpack.c.l.b16 %v243
    %v315 = vunpack.c.l.b16 %v244
    %v316 = vunpack.c.l.b16 %v245
    %v317 = vunpack.c.l.b16 %v246
    %v318 = vunpack.c.l.b16 %v247
    %v319 = vunpack.c.l.b16 %v248
    %v320 = vunpack.c.l.b16 %v249
    %v321 = vunpack.c.l.b16 %v250
    %v322 = vunpack.c.l.b16 %v251
    %v323 = vunpack.c.l.b16 %v252
    %v324 = vunpack.c.l.b16 %v253
    %v325 = vunpack.c.l.b16 %v254
    %v326 = vpack.c.b16 %v295, %v294
    %v327 = vpack.c.b16 %v297, %v296
    %v328 = vpack.c.b16 %v299, %v298
    %v329 = vpack.c.b16 %v301, %v300
    %v330 = vpack.c.b16 %v303, %v302
    %v331 = vpack.c.b16 %v305, %v304
    %v332 = vpack.c.b16 %v307, %v306
    %v333 = vpack.c.b16 %v309, %v308
    %v334 = vpack.c.b16 %v311, %v310
    %v335 = vpack.c.b16 %v313, %v312
    %v336 = vpack.c.b16 %v315, %v314
    %v337 = vpack.c.b16 %v317, %v316
    %v338 = vpack.c.b16 %v319, %v318
    %v339 = vpack.c.b16 %v321, %v320
    %v340 = vpack.c.b16 %v323, %v322
    %v341 = vpack.c.b16 %v325, %v324
    %358 = vmatprep.subr.bf16.mxu0 0
    %359 = vmatpush1.bf16.msra.mxu0 %v333
    %360 = vmatprep.subr.bf16.mxu0 0
    %361 = vmatpush1.bf16.msra.mxu0 %v332
    %362 = vmatprep.subr.bf16.mxu0 0
    %363 = vmatpush1.bf16.msra.mxu0 %v331
    %364 = vmatprep.subr.bf16.mxu0 0
    %365 = vmatpush1.bf16.msra.mxu0 %v330
    %366 = vmatprep.subr.bf16.mxu0 0
    %367 = vmatpush1.bf16.msra.mxu0 %v329
    %368 = vmatprep.subr.bf16.mxu0 0
    %369 = vmatpush1.bf16.msra.mxu0 %v328
    %370 = vmatprep.subr.bf16.mxu0 0
    %371 = vmatpush1.bf16.msra.mxu0 %v327
    %372 = vmatprep.subr.bf16.mxu0 0
    %373 = vmatpush1.bf16.msra.mxu0 %v326
    %374 = vmatprep.subr.bf16.mxu0 0
    %375 = vmatpush2.bf16.msra.mxu0 %v341
    %376 = vmatprep.subr.bf16.mxu0 0
    %377 = vmatpush2.bf16.msra.mxu0 %v340
    %378 = vmatprep.subr.bf16.mxu0 0
    %379 = vmatpush2.bf16.msra.mxu0 %v339
    %380 = vmatprep.subr.bf16.mxu0 0
    %381 = vmatpush2.bf16.msra.mxu0 %v338
    %382 = vmatprep.subr.bf16.mxu0 0
    %383 = vmatpush2.bf16.msra.mxu0 %v337
    %384 = vmatprep.subr.bf16.mxu0 0
    %385 = vmatpush2.bf16.msra.mxu0 %v336
    %386 = vmatprep.subr.bf16.mxu0 0
    %387 = vmatpush2.bf16.msra.mxu0 %v335
    %388 = vmatprep.subr.bf16.mxu0 0
    %389 = vmatpush2.bf16.msra.mxu0 %v334
    %390 = vmatprep.mubr.bf16.mxu0 %v222
    %391 = vmatmul.mubr.bf16.gmra.mxu0 %v221
    %v392 = vpop.f32.mrf.mxu0
    %v393 = vadd.f32 %v260, %v392
    %v394 = vpop.f32.mrf.mxu0
    %v395 = vpop.f32.mrf.mxu0
    %v396 = vadd.f32 %v260, %v395
    %v397 = vpop.f32.mrf.mxu0
    %398 = vdwg.mxu0
    %v399 = vmax.f32 %v393, 0.0
    %v400 = vmax.f32 %v396, 0.0
    %v401 = vadd.f32 %v399, %v399
    %v402 = vadd.f32 %v400, %v400
    %v403 = vsel %vm121, %v401, 0.0
    %v404 = vsel %vm122, %v402, 0.0
    %405 = vst [vmem:[#allocation10] sm:$0xff] %v403
    %406 = vst [vmem:[#allocation10 + $0x8] sm:$0xff] %v404
    // Predicated region
    $region34: #{tpu_custom_call.1} parent=1 // pred_check
      _
    $region35: #{tpu_custom_call.1} parent=1 // pred_check_branch
      %408 = sbr.rel (0) target = $region37
    $region36: #{tpu_custom_call.1} parent=1 // pred_region
      %s410 = ssub.s32 256, 256
      %411 = vsyncadd [#allocation6], %s410
      %s412 = sshll.u32 [#allocation10], 4
      %s413 = int_to_ptr.vmem [resolvable:$true] %s412
      %418 = dma.vmem_to_hbm [thread:$0]  %s413, 256, %s6, [#allocation6], 128, 128, 8
    $region37: #{tpu_custom_call.1} parent=1 // pred_fallthru
      _
    // Predicated region
    $region38: #{tpu_custom_call.1} parent=1 // pred_check
      _
    $region39: #{tpu_custom_call.1} parent=1 // pred_check_branch
      %420 = sbr.rel (0) target = $region41
    $region40: #{tpu_custom_call.1} parent=1 // pred_region
      %421 = dma.done [#allocation6], 256
    $region41: #{tpu_custom_call.1} parent=1 // pred_fallthru
      _
    %422 = vsyncpa [#allocation5], 1
    %423 = vsyncpa [#allocation8], 1
    %424 = vsyncpa [#allocation6], 1

</llo_original>
